<compile_context>
chip_gen: v5e
topology: v5e:2x2
jax: 0.10.0
libtpu: 0.0.40
codegen_flags: <defaults>
</compile_context>

<pallas_src>
import jax
import jax.numpy as jnp
from jax.experimental import pallas as pl
from jax.experimental.pallas import tpu as pltpu


# ---------------------------------------------------------------------------
# Kernel 1: adaLN precompute (tiny, runs once per forward).
#   shift = SiLU(c) @ W_shift + b_shift
#   scale = SiLU(c) @ W_scale + b_scale
#   one_plus_scale = 1 + scale
#   shift_bias     = shift @ W_lin_pad + b_lin_pad   (shift folded into bias)
# ---------------------------------------------------------------------------
def _adaln_precompute_kernel(c_ref, w_shift_ref, w_scale_ref, b_shift_ref,
                             b_scale_ref, w_lin_ref, b_lin_ref,
                             one_plus_scale_ref, shift_bias_ref):
    c = c_ref[...].astype(jnp.float32)                     # (B, H)
    silu_c = c * jax.nn.sigmoid(c)                         # SiLU (VPU + EUP)
    shift = jnp.dot(silu_c, w_shift_ref[...].astype(jnp.float32),
                    preferred_element_type=jnp.float32) + b_shift_ref[...]
    scale = jnp.dot(silu_c, w_scale_ref[...].astype(jnp.float32),
                    preferred_element_type=jnp.float32) + b_scale_ref[...]
    shift_bias = jnp.dot(shift, w_lin_ref[...].astype(jnp.float32),
                         preferred_element_type=jnp.float32) + b_lin_ref[...]
    one_plus_scale_ref[...] = 1.0 + scale
    shift_bias_ref[...] = shift_bias


# ---------------------------------------------------------------------------
# Kernel 2: streaming LayerNorm + modulate + final linear over (B, T tiles).
# ---------------------------------------------------------------------------
def _final_layer_kernel(x_ref, ops_ref, sb_ref, w_ref, o_ref):
    # x tile: (tile_T, H) -- LayerNorm statistics in f32 (VPU/EUP friendly).
    x = x_ref[0].astype(jnp.float32)
    mean = jnp.mean(x, axis=-1, keepdims=True)              # (tile_T, 1)
    centered = x - mean
    var = jnp.mean(centered * centered, axis=-1, keepdims=True)
    inv_std = jax.lax.rsqrt(var + 1e-6)                     # (tile_T, 1)

    # Fused modulation: per-row inv_std * per-batch (1 + scale) in one multiply.
    x_mod = centered * (inv_std * ops_ref[...])             # (tile_T, H)

    # MXU matmul with bf16 (or f32) operands, f32 accumulation; `shift` and
    # b_lin arrive pre-folded as a per-batch lane-dense bias.
    out = jnp.dot(x_mod.astype(w_ref.dtype), w_ref[...],
                  preferred_element_type=jnp.float32)       # (tile_T, D_pad)
    out = out + sb_ref[...]
    o_ref[0] = out.astype(o_ref.dtype)


def _choose_tile_t(T, target=256):
    """Largest multiple-of-8 divisor of T that is <= target (or T itself)."""
    if T <= target:
        return T
    for t in range(target, 7, -1):
        if T % t == 0 and t % 8 == 0:
            return t
    return T


def final_layer(x, c, w_ada, b_ada, w_lin, b_lin, *,
                mxu_dtype=jnp.bfloat16, tile_t_target=256):
    """Pallas FinalLayer forward.

    x:     (B, T, H)
    c:     (B, H)
    w_ada: (H, 2H)   (transposed vs. torch's (2H, H))
    b_ada: (2H,)
    w_lin: (H, D)    (transposed vs. torch's (D, H))
    b_lin: (D,)
    returns (B, T, D)
    """
    B, T, H = x.shape
    D = w_lin.shape[1]
    # Lane-dense output: pad only when D is not already a multiple of 128.
    D_pad = D if (D % 128 == 0) else ((D + 127) // 128) * 128
    D_pad = max(D_pad, 128)

    # Split adaLN weight into shift/scale halves (matches torch.chunk(2, dim=1)).
    w_shift = w_ada[:, :H]
    w_scale = w_ada[:, H:]
    b_shift = b_ada[:H].reshape(1, H)
    b_scale = b_ada[H:].reshape(1, H)

    # Final projection padded on the output (lane) dim.
    if D_pad != D:
        w_lin_p = jnp.pad(w_lin, ((0, 0), (0, D_pad - D)))
        b_lin_p = jnp.pad(b_lin, ((0, D_pad - D),)).reshape(1, D_pad)
    else:
        w_lin_p = w_lin
        b_lin_p = b_lin.reshape(1, D_pad)

    # --- tiny adaLN kernel (runs once) ---------------------------------------
    one_plus_scale, shift_bias = pl.pallas_call(
        _adaln_precompute_kernel,
        out_shape=(jax.ShapeDtypeStruct((B, H), jnp.float32),
                   jax.ShapeDtypeStruct((B, D_pad), jnp.float32)),
        grid_spec=pltpu.PrefetchScalarGridSpec(
            num_scalar_prefetch=0,
            grid=(1,),
            in_specs=[
                pl.BlockSpec((B, H), lambda i: (0, 0)),        # c
                pl.BlockSpec((H, H), lambda i: (0, 0)),        # w_shift
                pl.BlockSpec((H, H), lambda i: (0, 0)),        # w_scale
                pl.BlockSpec((1, H), lambda i: (0, 0)),        # b_shift
                pl.BlockSpec((1, H), lambda i: (0, 0)),        # b_scale
                pl.BlockSpec((H, D_pad), lambda i: (0, 0)),    # w_lin (padded)
                pl.BlockSpec((1, D_pad), lambda i: (0, 0)),    # b_lin (padded)
            ],
            out_specs=[pl.BlockSpec((B, H), lambda i: (0, 0)),
                       pl.BlockSpec((B, D_pad), lambda i: (0, 0))],
        ),
        compiler_params=pltpu.CompilerParams(
            dimension_semantics=("arbitrary",)),
    )(c, w_shift, w_scale, b_shift, b_scale, w_lin_p, b_lin_p)

    # --- streaming main kernel ------------------------------------------------
    tile_t = _choose_tile_t(T, tile_t_target)
    num_t = T // tile_t

    out_padded = pl.pallas_call(
        _final_layer_kernel,
        out_shape=jax.ShapeDtypeStruct((B, T, D_pad), x.dtype),
        grid_spec=pltpu.PrefetchScalarGridSpec(
            num_scalar_prefetch=0,
            grid=(B, num_t),
            in_specs=[
                pl.BlockSpec((1, tile_t, H), lambda b, t: (b, t, 0)),   # x tile
                pl.BlockSpec((1, H), lambda b, t: (b, 0)),              # 1+scale
                pl.BlockSpec((1, D_pad), lambda b, t: (b, 0)),          # shift bias
                pl.BlockSpec((H, D_pad), lambda b, t: (0, 0)),          # w_lin (resident)
            ],
            out_specs=pl.BlockSpec((1, tile_t, D_pad), lambda b, t: (b, t, 0)),
        ),
        compiler_params=pltpu.CompilerParams(
            dimension_semantics=("parallel", "parallel")),
    )(x, one_plus_scale, shift_bias, w_lin_p.astype(mxu_dtype))

    if D_pad != D:
        return out_padded[..., :D]
    return out_padded


def final_layer_ref(x, c, w_ada, b_ada, w_lin, b_lin):
    """Pure-JAX reference matching the PyTorch forward exactly."""
    silu_c = c * jax.nn.sigmoid(c)
    ada = silu_c @ w_ada + b_ada                       # (B, 2H)
    H = x.shape[-1]
    shift, scale = ada[:, :H], ada[:, H:]
    mean = jnp.mean(x, axis=-1, keepdims=True)
    var = jnp.mean((x - mean) ** 2, axis=-1, keepdims=True)
    x_norm = (x - mean) / jnp.sqrt(var + 1e-6)
    x_mod = x_norm * (1 + scale[:, None, :]) + shift[:, None, :]
    return x_mod @ w_lin + b_lin


if __name__ == "__main__":
    # Small shapes consistent with the module: batch=2, seq=8, hidden=32, d_model=16
    B, T, H, D = 2, 8, 32, 16

    key = jax.random.PRNGKey(0)
    kx, kc, kwa, kba, kwl, kbl = jax.random.split(key, 6)

    x = jax.random.normal(kx, (B, T, H), dtype=jnp.float32)
    c = jax.random.normal(kc, (B, H), dtype=jnp.float32)

    # Parameters stored transposed as (in, out) for the kernel's matmuls.
    w_ada = jax.random.normal(kwa, (H, 2 * H), dtype=jnp.float32) * 0.02
    b_ada = jax.random.normal(kba, (2 * H,), dtype=jnp.float32) * 0.02
    w_lin = jax.random.normal(kwl, (H, D), dtype=jnp.float32) * 0.02
    b_lin = jax.random.normal(kbl, (D,), dtype=jnp.float32) * 0.02

    ref = final_layer_ref(x, c, w_ada, b_ada, w_lin, b_lin)

    # Default (perf) path: bf16 MXU operands, f32 accumulation.
    out_bf16 = jax.block_until_ready(
        final_layer(x, c, w_ada, b_ada, w_lin, b_lin))
    assert out_bf16.shape == (B, T, D)
    assert jnp.allclose(out_bf16, ref, atol=2e-2, rtol=2e-2), "bf16 path mismatch"

    # Full-precision path: tight check against the pure-JAX reference.
    out_f32 = jax.block_until_ready(
        final_layer(x, c, w_ada, b_ada, w_lin, b_lin, mxu_dtype=jnp.float32))
    assert out_f32.shape == (B, T, D)
    assert jnp.allclose(out_f32, ref, atol=1e-4, rtol=1e-4), "f32 path mismatch"

    print("KERNEL_OK")
</pallas_src>

<mosaic_0001>
module attributes {stable_mosaic.version = 11 : i64} {
  func.func @_adaln_precompute_kernel(%arg0: i32, %arg1: memref<2x32xf32, #tpu.memory_space<vmem>>, %arg2: memref<32x32xf32, #tpu.memory_space<vmem>>, %arg3: memref<32x32xf32, #tpu.memory_space<vmem>>, %arg4: memref<1x32xf32, #tpu.memory_space<vmem>>, %arg5: memref<1x32xf32, #tpu.memory_space<vmem>>, %arg6: memref<32x128xf32, #tpu.memory_space<vmem>>, %arg7: memref<1x128xf32, #tpu.memory_space<vmem>>, %arg8: memref<2x32xf32, #tpu.memory_space<vmem>>, %arg9: memref<2x128xf32, #tpu.memory_space<vmem>>) attributes {dimension_semantics = [#tpu.dimension_semantics<arbitrary>], iteration_bounds = array<i64: 1>, scalar_prefetch = 0 : i64, scratch_operands = 0 : i64, tpu.core_type = #tpu.core_type<tc>, window_params = [{pipeline_mode = #tpu.pipeline_mode<synchronous>, transform_indices = @transform_0, window_bounds = array<i64: 2, 32>}, {pipeline_mode = #tpu.pipeline_mode<synchronous>, transform_indices = @transform_1, window_bounds = array<i64: 32, 32>}, {pipeline_mode = #tpu.pipeline_mode<synchronous>, transform_indices = @transform_2, window_bounds = array<i64: 32, 32>}, {pipeline_mode = #tpu.pipeline_mode<synchronous>, transform_indices = @transform_3, window_bounds = array<i64: 1, 32>}, {pipeline_mode = #tpu.pipeline_mode<synchronous>, transform_indices = @transform_4, window_bounds = array<i64: 1, 32>}, {pipeline_mode = #tpu.pipeline_mode<synchronous>, transform_indices = @transform_5, window_bounds = array<i64: 32, 128>}, {pipeline_mode = #tpu.pipeline_mode<synchronous>, transform_indices = @transform_6, window_bounds = array<i64: 1, 128>}, {pipeline_mode = #tpu.pipeline_mode<synchronous>, transform_indices = @transform_7, window_bounds = array<i64: 2, 32>}, {pipeline_mode = #tpu.pipeline_mode<synchronous>, transform_indices = @transform_8, window_bounds = array<i64: 2, 128>}]} {
    %c0 = arith.constant 0 : index
    %c0_0 = arith.constant 0 : index
    %0 = vector.load %arg1[%c0, %c0_0] : memref<2x32xf32, #tpu.memory_space<vmem>>, vector<2x32xf32>
    %1 = arith.negf %0 : vector<2x32xf32>
    %2 = math.exp %1 : vector<2x32xf32>
    %cst = arith.constant 1.000000e+00 : f32
    %3 = vector.broadcast %cst : f32 to vector<2x32xf32>
    %4 = arith.addf %3, %2 : vector<2x32xf32>
    %5 = arith.divf %3, %4 : vector<2x32xf32>
    %6 = arith.mulf %0, %5 : vector<2x32xf32>
    %c0_1 = arith.constant 0 : index
    %c0_2 = arith.constant 0 : index
    %7 = vector.load %arg2[%c0_1, %c0_2] : memref<32x32xf32, #tpu.memory_space<vmem>>, vector<32x32xf32>
    %cst_3 = arith.constant dense<0.000000e+00> : vector<2x32xf32>
    %8 = tpu.matmul %6, %7, %cst_3 {dimension_numbers = #tpu.dot_dimension_numbers<[1], [0], [0], [1], [0, 0, 1, 1], [], []>} : vector<2x32xf32>, vector<32x32xf32>, vector<2x32xf32> -> vector<2x32xf32>
    %c0_4 = arith.constant 0 : index
    %c0_5 = arith.constant 0 : index
    %9 = vector.load %arg4[%c0_4, %c0_5] : memref<1x32xf32, #tpu.memory_space<vmem>>, vector<1x32xf32>
    %10 = vector.broadcast %9 : vector<1x32xf32> to vector<2x32xf32>
    %11 = arith.addf %8, %10 : vector<2x32xf32>
    %c0_6 = arith.constant 0 : index
    %c0_7 = arith.constant 0 : index
    %12 = vector.load %arg3[%c0_6, %c0_7] : memref<32x32xf32, #tpu.memory_space<vmem>>, vector<32x32xf32>
    %cst_8 = arith.constant dense<0.000000e+00> : vector<2x32xf32>
    %13 = tpu.matmul %6, %12, %cst_8 {dimension_numbers = #tpu.dot_dimension_numbers<[1], [0], [0], [1], [0, 0, 1, 1], [], []>} : vector<2x32xf32>, vector<32x32xf32>, vector<2x32xf32> -> vector<2x32xf32>
    %c0_9 = arith.constant 0 : index
    %c0_10 = arith.constant 0 : index
    %14 = vector.load %arg5[%c0_9, %c0_10] : memref<1x32xf32, #tpu.memory_space<vmem>>, vector<1x32xf32>
    %15 = vector.broadcast %14 : vector<1x32xf32> to vector<2x32xf32>
    %16 = arith.addf %13, %15 : vector<2x32xf32>
    %c0_11 = arith.constant 0 : index
    %c0_12 = arith.constant 0 : index
    %17 = vector.load %arg6[%c0_11, %c0_12] : memref<32x128xf32, #tpu.memory_space<vmem>>, vector<32x128xf32>
    %cst_13 = arith.constant dense<0.000000e+00> : vector<2x128xf32>
    %18 = tpu.matmul %11, %17, %cst_13 {dimension_numbers = #tpu.dot_dimension_numbers<[1], [0], [0], [1], [0, 0, 1, 1], [], []>} : vector<2x32xf32>, vector<32x128xf32>, vector<2x128xf32> -> vector<2x128xf32>
    %c0_14 = arith.constant 0 : index
    %c0_15 = arith.constant 0 : index
    %19 = vector.load %arg7[%c0_14, %c0_15] : memref<1x128xf32, #tpu.memory_space<vmem>>, vector<1x128xf32>
    %20 = vector.broadcast %19 : vector<1x128xf32> to vector<2x128xf32>
    %21 = arith.addf %18, %20 : vector<2x128xf32>
    %cst_16 = arith.constant 1.000000e+00 : f32
    %22 = vector.broadcast %cst_16 : f32 to vector<2x32xf32>
    %23 = arith.addf %22, %16 : vector<2x32xf32>
    %c0_17 = arith.constant 0 : index
    %c0_18 = arith.constant 0 : index
    %24 = vector.load %arg8[%c0_17, %c0_18] : memref<2x32xf32, #tpu.memory_space<vmem>>, vector<2x32xf32>
    tpu.vector_store %arg8[%c0_17, %c0_18], %23 {strides = array<i32>} : memref<2x32xf32, #tpu.memory_space<vmem>>, vector<2x32xf32>,
    %c0_19 = arith.constant 0 : index
    %c0_20 = arith.constant 0 : index
    %25 = vector.load %arg9[%c0_19, %c0_20] : memref<2x128xf32, #tpu.memory_space<vmem>>, vector<2x128xf32>
    tpu.vector_store %arg9[%c0_19, %c0_20], %21 {strides = array<i32>} : memref<2x128xf32, #tpu.memory_space<vmem>>, vector<2x128xf32>,
    return
  }
  func.func @transform_0(%arg0: i32) -> (i32, i32) {
    %c0_i32 = arith.constant 0 : i32
    %c0_i32_0 = arith.constant 0 : i32
    %c0_i32_1 = arith.constant 0 : i32
    return %c0_i32, %c0_i32_0 : i32, i32
  }
  func.func @transform_1(%arg0: i32) -> (i32, i32) {
    %c0_i32 = arith.constant 0 : i32
    %c0_i32_0 = arith.constant 0 : i32
    %c0_i32_1 = arith.constant 0 : i32
    return %c0_i32, %c0_i32_0 : i32, i32
  }
  func.func @transform_2(%arg0: i32) -> (i32, i32) {
    %c0_i32 = arith.constant 0 : i32
    %c0_i32_0 = arith.constant 0 : i32
    %c0_i32_1 = arith.constant 0 : i32
    return %c0_i32, %c0_i32_0 : i32, i32
  }
  func.func @transform_3(%arg0: i32) -> (i32, i32) {
    %c0_i32 = arith.constant 0 : i32
    %c0_i32_0 = arith.constant 0 : i32
    %c0_i32_1 = arith.constant 0 : i32
    return %c0_i32, %c0_i32_0 : i32, i32
  }
  func.func @transform_4(%arg0: i32) -> (i32, i32) {
    %c0_i32 = arith.constant 0 : i32
    %c0_i32_0 = arith.constant 0 : i32
    %c0_i32_1 = arith.constant 0 : i32
    return %c0_i32, %c0_i32_0 : i32, i32
  }
  func.func @transform_5(%arg0: i32) -> (i32, i32) {
    %c0_i32 = arith.constant 0 : i32
    %c0_i32_0 = arith.constant 0 : i32
    %c0_i32_1 = arith.constant 0 : i32
    return %c0_i32, %c0_i32_0 : i32, i32
  }
  func.func @transform_6(%arg0: i32) -> (i32, i32) {
    %c0_i32 = arith.constant 0 : i32
    %c0_i32_0 = arith.constant 0 : i32
    %c0_i32_1 = arith.constant 0 : i32
    return %c0_i32, %c0_i32_0 : i32, i32
  }
  func.func @transform_7(%arg0: i32) -> (i32, i32) {
    %c0_i32 = arith.constant 0 : i32
    %c0_i32_0 = arith.constant 0 : i32
    %c0_i32_1 = arith.constant 0 : i32
    return %c0_i32, %c0_i32_0 : i32, i32
  }
  func.func @transform_8(%arg0: i32) -> (i32, i32) {
    %c0_i32 = arith.constant 0 : i32
    %c0_i32_0 = arith.constant 0 : i32
    %c0_i32_1 = arith.constant 0 : i32
    return %c0_i32, %c0_i32_0 : i32, i32
  }
}

</mosaic_0001>

<llo_original>
// kernel: tpu_custom_call.1
$region0: #{tpu_custom_call.1}
  #allocation0 [shape = 'u32[]', space=smem, size = 0x4, offset = 0x4, fixed_abs, tag = 'smem constant byte address 0x4 - core index']
  #allocation1 [shape = 'u32[72,128]{1,0:T(1,128)}', space=vmem, size = 0x9000, scoped, tag = 'internal scratch']
  %s0 = inlined_call_operand.hbm [shape: f32[2,32], index: 0, kind: input, shape index: {}]
  %s1 = inlined_call_operand.hbm [shape: f32[32,32], index: 1, kind: input, shape index: {}]
  %s2 = inlined_call_operand.hbm [shape: f32[32,32], index: 2, kind: input, shape index: {}]
  %s3 = inlined_call_operand.vmem [shape: f32[1,32], index: 3, kind: input, shape index: {}]
  %s4 = inlined_call_operand.vmem [shape: f32[1,32], index: 4, kind: input, shape index: {}]
  %s5 = inlined_call_operand.hbm [shape: f32[32,128], index: 5, kind: input, shape index: {}]
  %s6 = inlined_call_operand.vmem [shape: f32[1,128], index: 6, kind: input, shape index: {}]
  %s7 = inlined_call_operand.hbm [shape: f32[2,32], index: 7, kind: output, shape index: {0}]
  %s8 = inlined_call_operand.hbm [shape: f32[2,128], index: 8, kind: output, shape index: {1}]
  %9 = xla_tuple %s7, %s8
  %s10 = sld [smem:[#allocation0]]
  $region62: #{tpu_custom_call.1} parent=0
    _
  %s12 = ssub.s32 1, %s10
  %s13 = scalar_select 0, %s12, %s10
  $region1: #{tpu_custom_call.1} parent=0
    #allocation2 [shape = 'u8[1024]{0}', space=vmem, size = 0x400, scoped, tag = 'input window, operand 0, single buffered']
    #allocation3 [shape = 's32[1]{0}', space=sflag, size = 0x4, scoped, tag = 'scoped memory for tpu_custom_call.1']
    #allocation4 [shape = 's32[1]{0}', space=sflag, size = 0x4, scoped, tag = 'scoped memory for tpu_custom_call.1']
    #allocation5 [shape = 'u8[16384]{0}', space=vmem, size = 0x4000, scoped, tag = 'input window, operand 1, single buffered']
    #allocation6 [shape = 's32[1]{0}', space=sflag, size = 0x4, scoped, tag = 'scoped memory for tpu_custom_call.1']
    #allocation7 [shape = 'u8[16384]{0}', space=vmem, size = 0x4000, scoped, tag = 'input window, operand 2, single buffered']
    #allocation8 [shape = 'u8[16384]{0}', space=vmem, size = 0x4000, scoped, tag = 'input window, operand 5, single buffered']
    #allocation9 [shape = 's32[1]{0}', space=sflag, size = 0x4, scoped, tag = 'scoped memory for tpu_custom_call.1']
    #allocation10 [shape = 'u8[1024]{0}', space=vmem, size = 0x400, scoped, tag = 'output window, operand 0, single buffered']
    #allocation11 [shape = 'u8[1024]{0}', space=vmem, size = 0x400, scoped, tag = 'output window, operand 1, single buffered']
    #allocation12 [shape = 's32[1]{0}', space=sflag, size = 0x4, scoped, tag = 'scoped memory for tpu_custom_call.1']
    %14 = vsyncpa [#allocation3], 0
    %15 = vsyncpa [#allocation6], 0
    %16 = vsyncpa [#allocation9], 0
    %17 = vsyncpa [#allocation4], 0
    %18 = vsyncpa [#allocation12], 0
    // Predicated region
    $region2: #{tpu_custom_call.1} parent=1 // pred_check
      _
    $region3: #{tpu_custom_call.1} parent=1 // pred_check_branch
      %20 = sbr.rel (0) target = $region5
    $region4: #{tpu_custom_call.1} parent=1 // pred_region
      %22 = vsyncadd [#allocation3], 0
      %s24 = sshll.u32 %s0, 4
      %s25 = int_to_ptr.hbm [resolvable:$true] %s24
      %s26 = sshll.u32 [#allocation2], 4
      %s27 = int_to_ptr.vmem [resolvable:$true] %s26
      %29 = dma.hbm_to_vmem [thread:$0]  %s25, 32, %s27, [#allocation3]
    $region5: #{tpu_custom_call.1} parent=1 // pred_fallthru
      _
    // Predicated region
    $region6: #{tpu_custom_call.1} parent=1 // pred_check
      _
    $region7: #{tpu_custom_call.1} parent=1 // pred_check_branch
      %31 = sbr.rel (0) target = $region9
    $region8: #{tpu_custom_call.1} parent=1 // pred_region
      %33 = vsyncadd [#allocation6], 0
      %s34 = sshll.u32 %s1, 4
      %s35 = int_to_ptr.hbm [resolvable:$true] %s34
      %s36 = sshll.u32 [#allocation5], 4
      %s37 = int_to_ptr.vmem [resolvable:$true] %s36
      %42 = dma.hbm_to_vmem [thread:$0]  %s35, 512, %s37, [#allocation6], 128, 128, 8
    $region9: #{tpu_custom_call.1} parent=1 // pred_fallthru
      _
    // Predicated region
    $region10: #{tpu_custom_call.1} parent=1 // pred_check
      _
    $region11: #{tpu_custom_call.1} parent=1 // pred_check_branch
      %44 = sbr.rel (0) target = $region13
    $region12: #{tpu_custom_call.1} parent=1 // pred_region
      %46 = vsyncadd [#allocation6], 0
      %s47 = sshll.u32 %s2, 4
      %s48 = int_to_ptr.hbm [resolvable:$true] %s47
      %s49 = sshll.u32 [#allocation7], 4
      %s50 = int_to_ptr.vmem [resolvable:$true] %s49
      %55 = dma.hbm_to_vmem [thread:$0]  %s48, 512, %s50, [#allocation6], 128, 128, 8
    $region13: #{tpu_custom_call.1} parent=1 // pred_fallthru
      _
    // Predicated region
    $region14: #{tpu_custom_call.1} parent=1 // pred_check
      _
    $region15: #{tpu_custom_call.1} parent=1 // pred_check_branch
      %57 = sbr.rel (0) target = $region17
    $region16: #{tpu_custom_call.1} parent=1 // pred_region
      _
    $region17: #{tpu_custom_call.1} parent=1 // pred_fallthru
      _
    // Predicated region
    $region18: #{tpu_custom_call.1} parent=1 // pred_check
      _
    $region19: #{tpu_custom_call.1} parent=1 // pred_check_branch
      %59 = sbr.rel (0) target = $region21
    $region20: #{tpu_custom_call.1} parent=1 // pred_region
      _
    $region21: #{tpu_custom_call.1} parent=1 // pred_fallthru
      _
    // Predicated region
    $region22: #{tpu_custom_call.1} parent=1 // pred_check
      _
    $region23: #{tpu_custom_call.1} parent=1 // pred_check_branch
      %61 = sbr.rel (0) target = $region25
    $region24: #{tpu_custom_call.1} parent=1 // pred_region
      %63 = vsyncadd [#allocation9], 0
      %s64 = sshll.u32 %s5, 4
      %s65 = int_to_ptr.hbm [resolvable:$true] %s64
      %s66 = sshll.u32 [#allocation8], 4
      %s67 = int_to_ptr.vmem [resolvable:$true] %s66
      %72 = dma.hbm_to_vmem [thread:$0]  %s65, 512, %s67, [#allocation9], 128, 128, 8
    $region25: #{tpu_custom_call.1} parent=1 // pred_fallthru
      _
    // Predicated region
    $region26: #{tpu_custom_call.1} parent=1 // pred_check
      _
    $region27: #{tpu_custom_call.1} parent=1 // pred_check_branch
      %74 = sbr.rel (0) target = $region29
    $region28: #{tpu_custom_call.1} parent=1 // pred_region
      _
    $region29: #{tpu_custom_call.1} parent=1 // pred_fallthru
      _
    // Predicated region
    $region30: #{tpu_custom_call.1} parent=1 // pred_check
      _
    $region31: #{tpu_custom_call.1} parent=1 // pred_check_branch
      %76 = sbr.rel (0) target = $region33
    $region32: #{tpu_custom_call.1} parent=1 // pred_region
      %78 = dma.done [#allocation3], 32
    $region33: #{tpu_custom_call.1} parent=1 // pred_fallthru
      _
    // Predicated region
    $region34: #{tpu_custom_call.1} parent=1 // pred_check
      _
    $region35: #{tpu_custom_call.1} parent=1 // pred_check_branch
      %80 = sbr.rel (0) target = $region37
    $region36: #{tpu_custom_call.1} parent=1 // pred_region
      %82 = dma.done [#allocation6], 512
    $region37: #{tpu_custom_call.1} parent=1 // pred_fallthru
      _
    // Predicated region
    $region38: #{tpu_custom_call.1} parent=1 // pred_check
      _
    $region39: #{tpu_custom_call.1} parent=1 // pred_check_branch
      %84 = sbr.rel (0) target = $region41
    $region40: #{tpu_custom_call.1} parent=1 // pred_region
      %86 = dma.done [#allocation6], 512
    $region41: #{tpu_custom_call.1} parent=1 // pred_fallthru
      _
    // Predicated region
    $region42: #{tpu_custom_call.1} parent=1 // pred_check
      _
    $region43: #{tpu_custom_call.1} parent=1 // pred_check_branch
      %88 = sbr.rel (0) target = $region45
    $region44: #{tpu_custom_call.1} parent=1 // pred_region
      %90 = dma.done [#allocation9], 512
    $region45: #{tpu_custom_call.1} parent=1 // pred_fallthru
      _
    %v91 = vld [vmem:[#allocation2] sm:$0x3]
    %v92 = vxor.u32 %v91, 2147483648
    %v93 = vmul.f32 %v92, 1.442695
    %v94 = vpow.pop %v93
    %v95 = vadd.f32 %v94, 1.0
    %v96 = vrcp.pop %v95
    %v97 = vmul.f32 %v95, %v96
    %v98 = vsub.f32 1.0, %v97
    %v99 = vmul.f32 %v96, %v98
    %v100 = vadd.f32 %v96, %v99
    %vm101 = vweird.f32 %v95
    %vm102 = vweird.f32 %v96
    %vm103 = vmor %vm101, %vm102
    %v104 = vsel %vm103, %v96, %v100
    %v105 = vand.u32 2147483647, %v95
    %vm106 = vcmp.eq.f32.partialorder %v105, 8.507059e+37
    %v107 = vand.u32 %v95, 2147483648
    %v108 = vor.u32 1.1754944e-38, %v107
    %v109 = vsel %vm106, %v108, %v104
    %v110 = vmul.f32 1.0, %v109
    %v111 = vmul.f32 %v91, %v110
    %v112 = vld [vmem:[#allocation5] sm:$0xff]
    %v113 = vld [vmem:[#allocation5 + $0x8] sm:$0xff]
    %v114 = vld [vmem:[#allocation5 + $0x10] sm:$0xff]
    %v115 = vld [vmem:[#allocation5 + $0x18] sm:$0xff]
    %v116 = vld [vmem:[%s3] sm:$0x1]
    %v118 = vperm.slane %v116, 0
    %vm120 = vcmask 261120
    %v122 = vsel %vm120, %v111, 0
    %124 = vmatpush.msra.mxu0 0.0
    %125 = vmatpush.msra.mxu0 0.0
    %126 = vmatpush.msra.mxu0 0.0
    %127 = vmatpush.msra.mxu0 0.0
    %128 = vmatpush.msra.mxu0 0.0
    %129 = vmatpush.msra.mxu0 0.0
    %130 = vmatpush.msra.mxu0 0.0
    %131 = vmatpush.msra.mxu0 0.0
    %132 = vmatpush.msra.mxu0 0.0
    %133 = vmatpush.msra.mxu0 0.0
    %134 = vmatpush.msra.mxu0 0.0
    %135 = vmatpush.msra.mxu0 0.0
    %136 = vmatpush.msra.mxu0 %v115
    %137 = vmatpush.msra.mxu0 %v114
    %138 = vmatpush.msra.mxu0 %v113
    %139 = vmatpush.msra.mxu0 %v112
    %140 = vmatmul.f32.gmra.mxu0 %v122
    %v141 = vpop.f32.mrf.mxu0
    %v142 = vadd.f32 %v118, %v141
    %143 = vdwg.mxu0
    %v144 = vld [vmem:[#allocation7] sm:$0xff]
    %v145 = vld [vmem:[#allocation7 + $0x8] sm:$0xff]
    %v146 = vld [vmem:[#allocation7 + $0x10] sm:$0xff]
    %v147 = vld [vmem:[#allocation7 + $0x18] sm:$0xff]
    %v148 = vld [vmem:[%s4] sm:$0x1]
    %v150 = vperm.slane %v148, 0
    %152 = vmatpush.msra.mxu0 0.0
    %153 = vmatpush.msra.mxu0 0.0
    %154 = vmatpush.msra.mxu0 0.0
    %155 = vmatpush.msra.mxu0 0.0
    %156 = vmatpush.msra.mxu0 0.0
    %157 = vmatpush.msra.mxu0 0.0
    %158 = vmatpush.msra.mxu0 0.0
    %159 = vmatpush.msra.mxu0 0.0
    %160 = vmatpush.msra.mxu0 0.0
    %161 = vmatpush.msra.mxu0 0.0
    %162 = vmatpush.msra.mxu0 0.0
    %163 = vmatpush.msra.mxu0 0.0
    %164 = vmatpush.msra.mxu0 %v147
    %165 = vmatpush.msra.mxu0 %v146
    %166 = vmatpush.msra.mxu0 %v145
    %167 = vmatpush.msra.mxu0 %v144
    %168 = vmatmul.f32.gmra.mxu0 %v122
    %v169 = vpop.f32.mrf.mxu0
    %v170 = vadd.f32 %v150, %v169
    %171 = vdwg.mxu0
    %v172 = vld [vmem:[#allocation8] sm:$0xff]
    %v173 = vld [vmem:[#allocation8 + $0x8] sm:$0xff]
    %v174 = vld [vmem:[#allocation8 + $0x10] sm:$0xff]
    %v175 = vld [vmem:[#allocation8 + $0x18] sm:$0xff]
    %v176 = vld [vmem:[%s6] sm:$0x1]
    %v178 = vperm.slane %v176, 0
    %v181 = vsel %vm120, %v142, 0
    %183 = vmatpush.msra.mxu0 0.0
    %184 = vmatpush.msra.mxu0 0.0
    %185 = vmatpush.msra.mxu0 0.0
    %186 = vmatpush.msra.mxu0 0.0
    %187 = vmatpush.msra.mxu0 0.0
    %188 = vmatpush.msra.mxu0 0.0
    %189 = vmatpush.msra.mxu0 0.0
    %190 = vmatpush.msra.mxu0 0.0
    %191 = vmatpush.msra.mxu0 0.0
    %192 = vmatpush.msra.mxu0 0.0
    %193 = vmatpush.msra.mxu0 0.0
    %194 = vmatpush.msra.mxu0 0.0
    %195 = vmatpush.msra.mxu0 %v175
    %196 = vmatpush.msra.mxu0 %v174
    %197 = vmatpush.msra.mxu0 %v173
    %198 = vmatpush.msra.mxu0 %v172
    %199 = vmatmul.f32.gmra.mxu0 %v181
    %v200 = vpop.f32.mrf.mxu0
    %v201 = vadd.f32 %v178, %v200
    %202 = vdwg.mxu0
    %v203 = vadd.f32 %v170, 1.0
    %vm204 = vcmask 254976
    %205 = vst.msk [vmem:[#allocation10] sm:$0x3] %vm204, %v203
    %206 = vst [vmem:[#allocation11] sm:$0x3] %v201
    // Predicated region
    $region46: #{tpu_custom_call.1} parent=1 // pred_check
      _
    $region47: #{tpu_custom_call.1} parent=1 // pred_check_branch
      %208 = sbr.rel (0) target = $region49
    $region48: #{tpu_custom_call.1} parent=1 // pred_region
      %210 = vsyncadd [#allocation4], 0
      %s212 = sshll.u32 [#allocation10], 4
      %s213 = int_to_ptr.vmem [resolvable:$true] %s212
      %s214 = sshll.u32 %s7, 4
      %s215 = int_to_ptr.hbm [resolvable:$true] %s214
      %217 = dma.vmem_to_hbm [thread:$0]  %s213, 32, %s215, [#allocation4]
    $region49: #{tpu_custom_call.1} parent=1 // pred_fallthru
      _
    // Predicated region
    $region50: #{tpu_custom_call.1} parent=1 // pred_check
      _
    $region51: #{tpu_custom_call.1} parent=1 // pred_check_branch
      %219 = sbr.rel (0) target = $region53
    $region52: #{tpu_custom_call.1} parent=1 // pred_region
      %221 = vsyncadd [#allocation12], 0
      %s223 = sshll.u32 [#allocation11], 4
      %s224 = int_to_ptr.vmem [resolvable:$true] %s223
      %s225 = sshll.u32 %s8, 4
      %s226 = int_to_ptr.hbm [resolvable:$true] %s225
      %228 = dma.vmem_to_hbm [thread:$0]  %s224, 32, %s226, [#allocation12]
    $region53: #{tpu_custom_call.1} parent=1 // pred_fallthru
      _
    // Predicated region
    $region54: #{tpu_custom_call.1} parent=1 // pred_check
      _
    $region55: #{tpu_custom_call.1} parent=1 // pred_check_branch
      %230 = sbr.rel (0) target = $region57
    $region56: #{tpu_custom_call.1} parent=1 // pred_region
      %232 = dma.done [#allocation4], 32
    $region57: #{tpu_custom_call.1} parent=1 // pred_fallthru
      _
    // Predicated region
    $region58: #{tpu_custom_call.1} parent=1 // pred_check
      _
    $region59: #{tpu_custom_call.1} parent=1 // pred_check_branch
      %234 = sbr.rel (0) target = $region61
    $region60: #{tpu_custom_call.1} parent=1 // pred_region
      %236 = dma.done [#allocation12], 32
    $region61: #{tpu_custom_call.1} parent=1 // pred_fallthru
      _
    %237 = vsyncpa [#allocation3], 1
    %238 = vsyncpa [#allocation6], 1
    %239 = vsyncpa [#allocation9], 1
    %240 = vsyncpa [#allocation4], 1
    %241 = vsyncpa [#allocation12], 1

</llo_original>
